<compile_context>
chip_gen: v6e
topology: v6e:2x2x1
jax: 0.10.0
libtpu: 0.0.40
codegen_flags: <defaults>
</compile_context>

<pallas_src>
import functools

import numpy as np

import jax
import jax.numpy as jnp
from jax.experimental import pallas as pl
from jax.experimental.pallas import tpu as pltpu


_LANE = 128          # vreg lane width
_SUBLANE = 8         # f32 sublane count
_FULL_K_LIMIT = 2048 # below this an unaligned K is taken as one full-dim block


def _round_up(x, m):
    return ((x + m - 1) // m) * m


def _largest_tile(dim, limit, unit):
    """Largest multiple of `unit` that divides `dim` and is <= limit."""
    best = unit
    t = unit
    while t <= min(dim, limit):
        if dim % t == 0:
            best = t
        t += unit
    return best


def _hardware_config():
    """Generation-conditional tiling / VMEM limits (review feedback)."""
    vmem_bytes = None
    try:
        vmem_bytes = int(pltpu.get_tpu_info().vmem_capacity_bytes)
    except Exception:
        vmem_bytes = None
    if vmem_bytes is not None and vmem_bytes >= 128 * 1024 * 1024:
        # v5e / v6e: 128 MiB VMEM, single TensorCore, lower HBM BW -> large
        # resident tiles and a high scoped-VMEM cap.
        return dict(tm_max=1024, tn_max=1024, tk_max=512,
                    vmem_limit=96 * 1024 * 1024, two_tc=False)
    # v7x (64 MiB VMEM per TC, 2 TCs) or unknown generation: stay under ~48 MiB
    # scoped VMEM and make sure the parallel grid feeds both cores.
    return dict(tm_max=512, tn_max=512, tk_max=512,
                vmem_limit=48 * 1024 * 1024, two_tc=True)


def _plan_k(K, hw):
    """Reduction-axis tiling: (padded K, tk)."""
    if K % _LANE == 0:
        return K, _largest_tile(K, hw["tk_max"], _LANE)
    if K <= _FULL_K_LIMIT:
        # Full-dim block: legal regardless of (8,128), avoids padding x / W.
        return K, K
    Kp = _round_up(K, _LANE)
    return Kp, _largest_tile(Kp, hw["tk_max"], _LANE)


def _plan_n(N, hw):
    """Output-lane tiling: (padded N, tn).  N padded to 128 -> lane-dense stores."""
    Np = _round_up(N, _LANE)
    return Np, _largest_tile(Np, hw["tn_max"], _LANE)


def _plan_m(M, hw):
    """Row tiling: (padded M, tm)."""
    tm = hw["tm_max"] if M >= hw["tm_max"] else _round_up(M, _SUBLANE)
    return _round_up(M, tm), tm


def _apply_activation(y, activation):
    if activation is None or activation == "none":
        return y
    if callable(activation):            # mirror the torch module's Callable arg
        return activation(y)
    if activation == "relu":
        return jnp.maximum(y, 0.0)
    if activation == "tanh":
        return jnp.tanh(y)
    if activation == "gelu":
        return jax.nn.gelu(y)
    if activation == "sigmoid":
        return jax.nn.sigmoid(y)
    raise ValueError(f"Unsupported activation: {activation!r}")


def _linear_kernel(x_ref, w_ref, b_ref, o_ref, *acc_scratch, activation):
    """One (i, j, k) grid step of activation(x @ W.T + b).

    K (program_id 2) is the innermost reduction axis; the output block index is
    constant along it, so o_ref (or the optional f32 scratch when the output
    dtype is narrower than f32) stays resident in VMEM and is the accumulator.
    """
    acc_ref = acc_scratch[0] if acc_scratch else o_ref
    k = pl.program_id(2)

    @pl.when(k == 0)
    def _init():
        acc_ref[...] = jnp.zeros_like(acc_ref)

    # bf16 (or f32) x tile @ W.T tile -> f32 accumulate on the MXU.
    acc_ref[...] += jnp.dot(
        x_ref[...], w_ref[...], preferred_element_type=jnp.float32
    )

    @pl.when(k == pl.num_programs(2) - 1)
    def _finalize():
        y = acc_ref[...] + b_ref[...]              # [tm, tn] + [1, tn]
        o_ref[...] = _apply_activation(y, activation).astype(o_ref.dtype)


def prepare_linear_params(W, b, *, precision="bf16"):
    """One-time conversion of nn.Linear weights into kernel layout.

    W: [out_features, in_features] (torch layout), b: [out_features].
    Returns (wt_p, b_p): W.T in the matmul compute dtype, padded to the kernel's
    (Kp, Np) layout, and the f32 bias row.  Cache and reuse across forward calls
    (weights are static) — this keeps the O(K*N) transpose/cast/pad off the
    per-call path.
    """
    hw = _hardware_config()
    N, K = W.shape
    cdtype = jnp.bfloat16 if precision == "bf16" else jnp.float32

    Kp, _ = _plan_k(K, hw)
    Np, _ = _plan_n(N, hw)

    wt = W.T.astype(cdtype)
    if (Kp, Np) != (K, N):
        wt = jnp.zeros((Kp, Np), cdtype).at[:K, :N].set(wt)

    bias = b.astype(jnp.float32).reshape(1, N)
    if Np != N:
        bias = jnp.zeros((1, Np), jnp.float32).at[:, :N].set(bias)
    return wt, bias


def linear_forward(x, wt_p, b_p, n_out, *, activation="relu",
                   out_dtype=jnp.float32):
    """activation(x @ W.T + b) with pre-prepared (cached) weights.

    x: [..., in_features]; wt_p/b_p from prepare_linear_params(); n_out is the
    true out_features (output is sliced back if N was padded to a lane multiple).
    """
    hw = _hardware_config()
    out_dtype = np.dtype(out_dtype)

    orig_shape = x.shape
    K = orig_shape[-1]
    x2 = x.reshape(-1, K)
    M = x2.shape[0]
    N = int(n_out)

    Kp, tk = _plan_k(K, hw)
    Np, tn = _plan_n(N, hw)
    Mp, tm = _plan_m(M, hw)
    assert wt_p.shape == (Kp, Np), "prepared weights do not match x / n_out"

    # v7x has 2 TensorCores sharded over the "parallel" grid axes; make sure the
    # parallel part of the grid has >= 2 steps whenever the problem allows it.
    if hw["two_tc"] and (Mp // tm) * (Np // tn) == 1:
        if tn >= 2 * _LANE:
            tn //= 2
        elif tm % (2 * _SUBLANE) == 0:
            tm //= 2

    grid = (Mp // tm, Np // tn, Kp // tk)

    cdtype = wt_p.dtype
    if (Mp, Kp) == (M, K):
        x_in = x2.astype(cdtype)                   # no padded copy of x
    else:
        x_in = jnp.zeros((Mp, Kp), cdtype).at[:M, :K].set(x2.astype(cdtype))

    # f32 output -> accumulate straight into o_ref (no scratch).  Narrower output
    # (e.g. bf16) keeps an f32 scratch accumulator and casts at finalize.
    use_acc_scratch = out_dtype != np.dtype(np.float32)
    scratch = [pltpu.VMEM((tm, tn), jnp.float32)] if use_acc_scratch else []

    out = pl.pallas_call(
        functools.partial(_linear_kernel, activation=activation),
        out_shape=jax.ShapeDtypeStruct((Mp, Np), out_dtype),
        grid_spec=pltpu.PrefetchScalarGridSpec(
            num_scalar_prefetch=0,
            grid=grid,
            in_specs=[
                pl.BlockSpec((tm, tk), lambda i, j, k: (i, k)),   # x tile
                pl.BlockSpec((tk, tn), lambda i, j, k: (k, j)),   # W.T tile (cached)
                pl.BlockSpec((1, tn), lambda i, j, k: (0, j)),    # bias tile
            ],
            out_specs=pl.BlockSpec((tm, tn), lambda i, j, k: (i, j)),
            scratch_shapes=scratch,
        ),
        compiler_params=pltpu.CompilerParams(
            dimension_semantics=("parallel", "parallel", "arbitrary"),
            vmem_limit_bytes=hw["vmem_limit"],
        ),
    )(x_in, wt_p, b_p)

    out = out[:M, :N]
    return out.reshape(*orig_shape[:-1], N)


def linear_layer(x, W, b, *, activation="relu", precision="bf16",
                 out_dtype=jnp.float32, use_pallas=None):
    """One-shot Linear_Layer forward: activation(x @ W.T + b).

    Prepares weights on every call; for a layer applied repeatedly, call
    prepare_linear_params() once and linear_forward() per step.  Tiny problems
    (single-step grid) are dispatched to plain XLA where a Pallas call would be
    pure per-step overhead.
    """
    if activation is not None and not callable(activation) and \
            activation not in ("none", "relu", "tanh", "gelu", "sigmoid"):
        raise ValueError(f"Unsupported activation: {activation!r}")

    N, K = W.shape
    M = int(np.prod(x.shape[:-1])) if x.ndim > 1 else 1

    if use_pallas is None:
        use_pallas = (M * N * K) >= (128 * 128 * 128)

    if not use_pallas:
        cdtype = jnp.bfloat16 if precision == "bf16" else jnp.float32
        y = jnp.einsum("...k,nk->...n", x.astype(cdtype), W.astype(cdtype),
                       preferred_element_type=jnp.float32)
        y = y + b.astype(jnp.float32)
        return _apply_activation(y, activation).astype(out_dtype)

    wt_p, b_p = prepare_linear_params(W, b, precision=precision)
    return linear_forward(x, wt_p, b_p, N, activation=activation,
                          out_dtype=out_dtype)


if __name__ == "__main__":
    key = jax.random.PRNGKey(0)
    k1, k2, k3, k4, k5, k6 = jax.random.split(key, 6)

    # ------------------------------------------------------------------
    # 1) Module-implied small shapes: batch=2, seq=8, in=32, out=64.
    #    Pallas path with prepared (cached) weights, f32 output, relu.
    # ------------------------------------------------------------------
    B, S, IN, OUT = 2, 8, 32, 64
    x = jax.random.normal(k1, (B, S, IN), dtype=jnp.float32)
    W = jax.random.normal(k2, (OUT, IN), dtype=jnp.float32) / jnp.sqrt(IN)
    b = jax.random.normal(k3, (OUT,), dtype=jnp.float32) * 0.1

    wt_p, b_p = prepare_linear_params(W, b, precision="bf16")   # once, cached
    fwd = jax.jit(lambda xi: linear_forward(xi, wt_p, b_p, OUT, activation="relu"))
    out = jax.block_until_ready(fwd(x))
    assert out.shape == (B, S, OUT)

    # Reference mirroring bf16 MXU inputs with f32 accumulation.
    xb = x.astype(jnp.bfloat16).astype(jnp.float32)
    Wb = W.astype(jnp.bfloat16).astype(jnp.float32)
    ref = jnp.maximum(jnp.einsum("bsi,oi->bso", xb, Wb) + b, 0.0)
    assert jnp.allclose(out, ref, atol=1e-3, rtol=1e-3), float(
        jnp.max(jnp.abs(out - ref)))

    # Looser check against the full-f32 math of the PyTorch module.
    ref_f32 = jnp.maximum(jnp.einsum("bsi,oi->bso", x, W) + b, 0.0)
    assert jnp.allclose(out, ref_f32, atol=5e-2, rtol=5e-2)

    # One-shot wrapper: at this size it auto-dispatches to XLA (same numerics).
    out_xla = jax.block_until_ready(linear_layer(x, W, b, activation="relu"))
    assert jnp.allclose(out_xla, ref, atol=1e-3, rtol=1e-3)

    # ------------------------------------------------------------------
    # 2) Moderately larger shape: exercises tiled K (multiple reduction steps),
    #    the bf16-output path (f32 scratch accumulator) and tanh.
    # ------------------------------------------------------------------
    B2, S2, IN2, OUT2 = 2, 64, 1024, 256
    x2 = jax.random.normal(k4, (B2, S2, IN2), dtype=jnp.float32)
    W2 = jax.random.normal(k5, (OUT2, IN2), dtype=jnp.float32) / jnp.sqrt(IN2)
    b2 = jax.random.normal(k6, (OUT2,), dtype=jnp.float32) * 0.1

    wt2_p, b2_p = prepare_linear_params(W2, b2, precision="bf16")
    fwd2 = jax.jit(lambda xi: linear_forward(xi, wt2_p, b2_p, OUT2,
                                             activation="tanh",
                                             out_dtype=jnp.bfloat16))
    out2 = jax.block_until_ready(fwd2(x2))
    assert out2.shape == (B2, S2, OUT2) and out2.dtype == jnp.bfloat16

    xb2 = x2.astype(jnp.bfloat16).astype(jnp.float32)
    Wb2 = W2.astype(jnp.bfloat16).astype(jnp.float32)
    ref2 = jnp.tanh(jnp.einsum("bsi,oi->bso", xb2, Wb2) + b2)
    assert jnp.allclose(out2.astype(jnp.float32), ref2, atol=2e-2, rtol=2e-2), float(
        jnp.max(jnp.abs(out2.astype(jnp.float32) - ref2)))

    print("KERNEL_OK")
</pallas_src>

<mosaic_0001>
module attributes {stable_mosaic.version = 11 : i64} {
  func.func @_linear_kernel(%arg0: i32, %arg1: i32, %arg2: i32, %arg3: memref<8x32xbf16, #tpu.memory_space<vmem>>, %arg4: memref<32x128xbf16, #tpu.memory_space<vmem>>, %arg5: memref<1x128xf32, #tpu.memory_space<vmem>>, %arg6: memref<8x128xf32, #tpu.memory_space<vmem>>) attributes {dimension_semantics = [#tpu.dimension_semantics<parallel>, #tpu.dimension_semantics<parallel>, #tpu.dimension_semantics<arbitrary>], iteration_bounds = array<i64: 2, 1, 1>, scalar_prefetch = 0 : i64, scratch_operands = 0 : i64, tpu.core_type = #tpu.core_type<tc>, window_params = [{transform_indices = @transform_0, window_bounds = array<i64: 8, 32>}, {transform_indices = @transform_1, window_bounds = array<i64: 32, 128>}, {transform_indices = @transform_2, window_bounds = array<i64: 1, 128>}, {transform_indices = @transform_3, window_bounds = array<i64: 8, 128>}]} {
    %c0_i32 = arith.constant 0 : i32
    %0 = arith.cmpi eq, %arg2, %c0_i32 : i32
    %1 = arith.extui %0 : i1 to i32
    %c0_i32_0 = arith.constant 0 : i32
    %2 = arith.cmpi ne, %1, %c0_i32_0 : i32
    scf.if %2 {
      %cst_10 = arith.constant 0.000000e+00 : f32
      %12 = vector.broadcast %cst_10 : f32 to vector<8x128xf32>
      %c0_11 = arith.constant 0 : index
      %c0_12 = arith.constant 0 : index
      %13 = vector.load %arg6[%c0_11, %c0_12] : memref<8x128xf32, #tpu.memory_space<vmem>>, vector<8x128xf32>
      tpu.vector_store %arg6[%c0_11, %c0_12], %12 {strides = array<i32>} : memref<8x128xf32, #tpu.memory_space<vmem>>, vector<8x128xf32>,
    } else {
    }
    %c0 = arith.constant 0 : index
    %c0_1 = arith.constant 0 : index
    %3 = vector.load %arg6[%c0, %c0_1] : memref<8x128xf32, #tpu.memory_space<vmem>>, vector<8x128xf32>
    %c0_2 = arith.constant 0 : index
    %c0_3 = arith.constant 0 : index
    %4 = vector.load %arg3[%c0_2, %c0_3] : memref<8x32xbf16, #tpu.memory_space<vmem>>, vector<8x32xbf16>
    %c0_4 = arith.constant 0 : index
    %c0_5 = arith.constant 0 : index
    %5 = vector.load %arg4[%c0_4, %c0_5] : memref<32x128xbf16, #tpu.memory_space<vmem>>, vector<32x128xbf16>
    %cst = arith.constant dense<0.000000e+00> : vector<8x128xf32>
    %6 = tpu.matmul %4, %5, %cst {dimension_numbers = #tpu.dot_dimension_numbers<[1], [0], [0], [1], [0, 0, 1, 1], [], []>} : vector<8x32xbf16>, vector<32x128xbf16>, vector<8x128xf32> -> vector<8x128xf32>
    %7 = arith.addf %3, %6 : vector<8x128xf32>
    %c0_6 = arith.constant 0 : index
    %c0_7 = arith.constant 0 : index
    %8 = vector.load %arg6[%c0_6, %c0_7] : memref<8x128xf32, #tpu.memory_space<vmem>>, vector<8x128xf32>
    tpu.vector_store %arg6[%c0_6, %c0_7], %7 {strides = array<i32>} : memref<8x128xf32, #tpu.memory_space<vmem>>, vector<8x128xf32>,
    %c0_i32_8 = arith.constant 0 : i32
    %9 = arith.cmpi eq, %arg2, %c0_i32_8 : i32
    %10 = arith.extui %9 : i1 to i32
    %c0_i32_9 = arith.constant 0 : i32
    %11 = arith.cmpi ne, %10, %c0_i32_9 : i32
    scf.if %11 {
      %c0_10 = arith.constant 0 : index
      %c0_11 = arith.constant 0 : index
      %12 = vector.load %arg6[%c0_10, %c0_11] : memref<8x128xf32, #tpu.memory_space<vmem>>, vector<8x128xf32>
      %c0_12 = arith.constant 0 : index
      %c0_13 = arith.constant 0 : index
      %13 = vector.load %arg5[%c0_12, %c0_13] : memref<1x128xf32, #tpu.memory_space<vmem>>, vector<1x128xf32>
      %14 = vector.broadcast %13 : vector<1x128xf32> to vector<8x128xf32>
      %15 = arith.addf %12, %14 : vector<8x128xf32>
      %cst_14 = arith.constant 0.000000e+00 : f32
      %16 = vector.broadcast %cst_14 : f32 to vector<8x128xf32>
      %17 = arith.maximumf %15, %16 : vector<8x128xf32>
      %c0_15 = arith.constant 0 : index
      %c0_16 = arith.constant 0 : index
      %18 = vector.load %arg6[%c0_15, %c0_16] : memref<8x128xf32, #tpu.memory_space<vmem>>, vector<8x128xf32>
      tpu.vector_store %arg6[%c0_15, %c0_16], %17 {strides = array<i32>} : memref<8x128xf32, #tpu.memory_space<vmem>>, vector<8x128xf32>,
    } else {
    }
    return
  }
  func.func @transform_0(%arg0: i32, %arg1: i32, %arg2: i32) -> (i32, i32) {
    %c0_i32 = arith.constant 0 : i32
    return %arg0, %arg2 : i32, i32
  }
  func.func @transform_1(%arg0: i32, %arg1: i32, %arg2: i32) -> (i32, i32) {
    %c0_i32 = arith.constant 0 : i32
    return %arg2, %arg1 : i32, i32
  }
  func.func @transform_2(%arg0: i32, %arg1: i32, %arg2: i32) -> (i32, i32) {
    %c0_i32 = arith.constant 0 : i32
    %c0_i32_0 = arith.constant 0 : i32
    return %c0_i32, %arg1 : i32, i32
  }
  func.func @transform_3(%arg0: i32, %arg1: i32, %arg2: i32) -> (i32, i32) {
    %c0_i32 = arith.constant 0 : i32
    return %arg0, %arg1 : i32, i32
  }
}

</mosaic_0001>

<llo_original>
// kernel: _lambda_.1
$region0: #{_lambda_.1}
  #allocation0 [shape = 'u32[]', space=smem, size = 0x4, offset = 0x4, fixed_abs, tag = 'smem constant byte address 0x4 - core index']
  #allocation1 [shape = 'u32[144,128]{1,0:T(1,128)}', space=vmem, size = 0x12000, scoped, tag = 'internal scratch']
  %s0 = inlined_call_operand.vmem [shape: bf16[16,32], index: 0, kind: input, shape index: {}]
  %s1 = inlined_call_operand.vmem [shape: bf16[32,128], index: 1, kind: input, shape index: {}]
  %s2 = inlined_call_operand.vmem [shape: f32[1,128], index: 2, kind: input, shape index: {}]
  %s3 = inlined_call_operand.vmem [shape: f32[16,128], index: 3, kind: output, shape index: {}]
  %s4 = sld [smem:[#allocation0]]
  $region53: #{_lambda_.1} parent=0
    _
  %s6 = ssub.s32 1, %s4
  %s7 = scalar_select 0, %s6, %s4
  loop: start=0, step=1, limit=4
  $region2: #{_lambda_.1} parent=0 // loop_pre_header
    _
  $region3: #{_lambda_.1} parent=0 // loop_header
    %s9 = sphi 0, %s13
    %p10 = scmp.ge.s32.totalorder %s9, 4
    %s16 = sphi 0, %s35
    %s17 = sphi 0, %s31
    %s18 = sphi 0, %s27
    %s19 = sphi 0, %s16
    %s20 = sphi 0, %s17
    %s21 = sphi 0, %s18
    %s22 = sphi 0, %s19
    %s23 = sphi 0, %s20
    %s24 = sphi 0, %s21
    %s40 = sphi 0, %s42
    %s43 = sphi 0, %s40
    %s44 = sphi 0, %s43
    %s60 = sphi 0, %s44
    %s68 = sphi 0, %s70
    %s71 = sphi 0, %s68
    %s72 = sphi 0, %s71
    %s88 = sphi 0, %s72
    %s94 = sphi 0, %s96
    %s97 = sphi 0, %s94
    %s98 = sphi 0, %s97
    %s114 = sphi 0, %s98
    %s122 = sphi 0, %s124
    %s125 = sphi 0, %s122
    %s126 = sphi 0, %s125
    %s142 = sphi 0, %s126
  $region4: #{_lambda_.1} parent=0 // loop_header_branch
    %12 = sbr.rel (%p10) target = $region8
  $region5: #{_lambda_.1} parent=0 // loop_body
    %s14 = ssub.s32 %s9, 1
    %s15 = ssub.s32 %s9, 2
    %s25 = sadd.s32 1, %s18
    %p26 = scmp.ge.s32.totalorder %s25, 1
    %s27 = scalar_select %p26, 0, %s25
    %s28 = sadd.s32 1, %s17
    %s29 = scalar_select %p26, %s28, %s17
    %p30 = scmp.ge.s32.totalorder %s29, 1
    %s31 = scalar_select %p30, 0, %s29
    %s32 = sadd.s32 1, %s16
    %s33 = scalar_select %p30, %s32, %s16
    %p34 = scmp.ge.s32.totalorder %s33, 2
    %s35 = scalar_select %p34, 0, %s33
    %s36 = ssub.s32 %s16, %s35
    %s37 = ssub.s32 %s18, %s27
    %s38 = sor.u32 %s36, %s37
    %p39 = scmp.eq.s32.totalorder %s38, 0
    %s41 = sadd.s32 %s40, 1
    %s42 = scalar_select %p39, %s40, %s41
    %p45 = pneg %p39
    %p46 = scmp.eq.s32.totalorder %s9, 1
    %p47 = por %p45, %p46
    %p48 = scmp.ne.s32.totalorder %s40, %s43
    %p49 = scmp.eq.s32.totalorder %s9, 0
    %p50 = por %p48, %p49
    %p51 = scmp.ne.s32.totalorder %s40, %s43
    %p52 = scmp.eq.s32.totalorder %s14, 1
    %p53 = por %p51, %p52
    %p54 = scmp.ne.s32.totalorder %s43, %s44
    %p55 = scmp.eq.s32.totalorder %s14, 0
    %p56 = por %p54, %p55
    %p57 = scmp.ne.s32.totalorder %s43, %s44
    %p58 = scmp.eq.s32.totalorder %s15, 1
    %p59 = por %p57, %p58
    %p61 = scmp.ne.s32.totalorder %s44, %s60
    %p62 = scmp.eq.s32.totalorder %s15, 0
    %p63 = por %p61, %p62
    %s64 = ssub.s32 %s18, %s27
    %s65 = ssub.s32 %s17, %s31
    %s66 = sor.u32 %s64, %s65
    %p67 = scmp.eq.s32.totalorder %s66, 0
    %s69 = sadd.s32 %s68, 1
    %s70 = scalar_select %p67, %s68, %s69
    %p73 = pneg %p67
    %p74 = scmp.eq.s32.totalorder %s9, 1
    %p75 = por %p73, %p74
    %p76 = scmp.ne.s32.totalorder %s68, %s71
    %p77 = scmp.eq.s32.totalorder %s9, 0
    %p78 = por %p76, %p77
    %p79 = scmp.ne.s32.totalorder %s68, %s71
    %p80 = scmp.eq.s32.totalorder %s14, 1
    %p81 = por %p79, %p80
    %p82 = scmp.ne.s32.totalorder %s71, %s72
    %p83 = scmp.eq.s32.totalorder %s14, 0
    %p84 = por %p82, %p83
    %p85 = scmp.ne.s32.totalorder %s71, %s72
    %p86 = scmp.eq.s32.totalorder %s15, 1
    %p87 = por %p85, %p86
    %p89 = scmp.ne.s32.totalorder %s72, %s88
    %p90 = scmp.eq.s32.totalorder %s15, 0
    %p91 = por %p89, %p90
    %s92 = ssub.s32 %s17, %s31
    %p93 = scmp.eq.s32.totalorder %s92, 0
    %s95 = sadd.s32 %s94, 1
    %s96 = scalar_select %p93, %s94, %s95
    %p99 = pneg %p93
    %p100 = scmp.eq.s32.totalorder %s9, 1
    %p101 = por %p99, %p100
    %p102 = scmp.ne.s32.totalorder %s94, %s97
    %p103 = scmp.eq.s32.totalorder %s9, 0
    %p104 = por %p102, %p103
    %p105 = scmp.ne.s32.totalorder %s94, %s97
    %p106 = scmp.eq.s32.totalorder %s14, 1
    %p107 = por %p105, %p106
    %p108 = scmp.ne.s32.totalorder %s97, %s98
    %p109 = scmp.eq.s32.totalorder %s14, 0
    %p110 = por %p108, %p109
    %p111 = scmp.ne.s32.totalorder %s97, %s98
    %p112 = scmp.eq.s32.totalorder %s15, 1
    %p113 = por %p111, %p112
    %p115 = scmp.ne.s32.totalorder %s98, %s114
    %p116 = scmp.eq.s32.totalorder %s15, 0
    %p117 = por %p115, %p116
    %s118 = ssub.s32 %s16, %s35
    %s119 = ssub.s32 %s17, %s31
    %s120 = sor.u32 %s118, %s119
    %p121 = scmp.eq.s32.totalorder %s120, 0
    %s123 = sadd.s32 %s122, 1
    %s124 = scalar_select %p121, %s122, %s123
    %p127 = pneg %p121
    %p128 = scmp.eq.s32.totalorder %s9, 1
    %p129 = por %p127, %p128
    %p130 = scmp.ne.s32.totalorder %s122, %s125
    %p131 = scmp.eq.s32.totalorder %s9, 0
    %p132 = por %p130, %p131
    %p133 = scmp.ne.s32.totalorder %s122, %s125
    %p134 = scmp.eq.s32.totalorder %s14, 1
    %p135 = por %p133, %p134
    %p136 = scmp.ne.s32.totalorder %s125, %s126
    %p137 = scmp.eq.s32.totalorder %s14, 0
    %p138 = por %p136, %p137
    %p139 = scmp.ne.s32.totalorder %s125, %s126
    %p140 = scmp.eq.s32.totalorder %s15, 1
    %p141 = por %p139, %p140
    %p143 = scmp.ne.s32.totalorder %s126, %s142
    %p144 = scmp.eq.s32.totalorder %s15, 0
    %p145 = por %p143, %p144
    %p146 = scmp.le.s32.totalorder 1, %s9
    %p147 = scmp.lt.s32.totalorder %s9, 3
    %p148 = pnand %p146, %p147
    %p149 = pneg %p148
    // Predicated region
    $region9: #{_lambda_.1} parent=5 // pred_check
      _
    $region10: #{_lambda_.1} parent=5 // pred_check_branch
      %151 = sbr.rel (%p148) target = $region12
    $region11: #{_lambda_.1} parent=5 // pred_region
      %s152 = ssub.s32 %s9, 1
      // Predicated region
      $region13: #{_lambda_.1} parent=11 // pred_check
        %p153 = pneg %p84
      $region14: #{_lambda_.1} parent=11 // pred_check_branch
        %155 = sbr.rel (%p153) target = $region16
      $region15: #{_lambda_.1} parent=11 // pred_region
        %s156 = smul.u32 4, %s21
        %p157 = scmp.lt.s32.totalorder %s156, 3
        %s158 = scalar_select %p157, %s156, 3
        %p159 = scmp.lt.s32.totalorder %s20, 0
        %s160 = scalar_select %p159, %s20, 0
        %s161 = sadd.s32 %s160, %s158
        %s162 = smul.addr %s161, 4
        %s163 = scalar_lea.vmem %s1, %s162
        %s164 = smul.u32 4, %s21
      $region16: #{_lambda_.1} parent=11 // pred_fallthru
        _
      // Predicated region
      $region17: #{_lambda_.1} parent=11 // pred_check
        %p165 = pneg %p110
      $region18: #{_lambda_.1} parent=11 // pred_check_branch
        %167 = sbr.rel (%p165) target = $region20
      $region19: #{_lambda_.1} parent=11 // pred_region
        %p168 = scmp.lt.s32.totalorder %s20, 0
        %s169 = scalar_select %p168, %s20, 0
        %s170 = scalar_lea.vmem %s2, %s169
      $region20: #{_lambda_.1} parent=11 // pred_fallthru
        _
    $region12: #{_lambda_.1} parent=5 // pred_fallthru
      _
    %p171 = scmp.lt.s32.totalorder %s9, 2
    // Predicated region
    $region21: #{_lambda_.1} parent=5 // pred_check
      %p172 = pneg %p171
    $region22: #{_lambda_.1} parent=5 // pred_check_branch
      %174 = sbr.rel (%p172) target = $region24
    $region23: #{_lambda_.1} parent=5 // pred_region
      // Predicated region
      $region25: #{_lambda_.1} parent=23 // pred_check
        %p175 = pneg %p50
      $region26: #{_lambda_.1} parent=23 // pred_check_branch
        %177 = sbr.rel (%p175) target = $region28
      $region27: #{_lambda_.1} parent=23 // pred_region
        %p178 = scmp.lt.s32.totalorder %s16, 1
        %s179 = scalar_select %p178, %s16, 1
        %p180 = scmp.lt.s32.totalorder %s18, 0
        %s181 = scalar_select %p180, %s18, 0
        %s182 = sadd.s32 %s181, %s179
        %s183 = smul.addr %s182, 4
        %s184 = scalar_lea.vmem %s0, %s183
      $region28: #{_lambda_.1} parent=23 // pred_fallthru
        _
    $region24: #{_lambda_.1} parent=5 // pred_fallthru
      _
    %p185 = scmp.le.s32.totalorder 1, %s9
    %p186 = scmp.lt.s32.totalorder %s9, 3
    %p187 = pnand %p185, %p186
    %p188 = pneg %p187
    // Predicated region
    $region29: #{_lambda_.1} parent=5 // pred_check
      _
    $region30: #{_lambda_.1} parent=5 // pred_check_branch
      %190 = sbr.rel (%p187) target = $region32
    $region31: #{_lambda_.1} parent=5 // pred_region
      %s191 = ssub.s32 %s9, 1
      %p192 = scmp.lt.s32.totalorder %s19, 1
      %s193 = scalar_select %p192, %s19, 1
      %p194 = scmp.lt.s32.totalorder %s21, 0
      %s195 = scalar_select %p194, %s21, 0
      %s196 = sadd.s32 %s195, %s193
      %s197 = smul.addr %s196, 4
      %s198 = scalar_lea.vmem %s0, %s197
      %p199 = pneg %p56
      %p200 = pneg %p53
      %s201 = smul.u32 4, %s21
      %p202 = scmp.lt.s32.totalorder %s201, 3
      %s203 = scalar_select %p202, %s201, 3
      %p204 = scmp.lt.s32.totalorder %s20, 0
      %s205 = scalar_select %p204, %s20, 0
      %s206 = sadd.s32 %s205, %s203
      %s207 = smul.addr %s206, 4
      %s208 = scalar_lea.vmem %s1, %s207
      %p209 = pneg %p84
      %p210 = pneg %p81
      %p211 = scmp.lt.s32.totalorder %s20, 0
      %s212 = scalar_select %p211, %s20, 0
      %s213 = scalar_lea.vmem %s2, %s212
      %p214 = pneg %p110
      %p215 = pneg %p107
      %p216 = pneg %p138
      %p217 = pneg %p135
      %p218 = scmp.lt.s32.totalorder %s19, 1
      %s219 = scalar_select %p218, %s19, 1
      %p220 = scmp.lt.s32.totalorder %s20, 0
      %s221 = scalar_select %p220, %s20, 0
      %s222 = sadd.s32 %s221, %s219
      %s223 = smul.addr %s222, 8
      %s224 = scalar_lea.vmem %s3, %s223
      %p225 = scmp.lt.s32.totalorder %s19, 1
      %s226 = scalar_select %p225, %s19, 1
      %p227 = scmp.lt.s32.totalorder %s21, 0
      %s228 = scalar_select %p227, %s21, 0
      %s229 = sadd.s32 %s228, %s226
      %s230 = smul.addr %s229, 4
      %s231 = scalar_lea.vmem %s0, %s230
      %s232 = smul.u32 4, %s21
      %p233 = scmp.lt.s32.totalorder %s232, 3
      %s234 = scalar_select %p233, %s232, 3
      %p235 = scmp.lt.s32.totalorder %s20, 0
      %s236 = scalar_select %p235, %s20, 0
      %s237 = sadd.s32 %s236, %s234
      %s238 = smul.addr %s237, 4
      %s239 = scalar_lea.vmem %s1, %s238
      %s240 = smul.u32 4, %s21
      %p241 = scmp.lt.s32.totalorder %s20, 0
      %s242 = scalar_select %p241, %s20, 0
      %s243 = scalar_lea.vmem %s2, %s242
      %p244 = scmp.lt.s32.totalorder %s19, 1
      %s245 = scalar_select %p244, %s19, 1
      %p246 = scmp.lt.s32.totalorder %s20, 0
      %s247 = scalar_select %p246, %s20, 0
      %s248 = sadd.s32 %s247, %s245
      %s249 = smul.addr %s248, 8
      %s250 = scalar_lea.vmem %s3, %s249
      %p252 = scmp.eq.s32.totalorder %s21, 0
      // Predicated region
      $region33: #{_lambda_.1} parent=31 // pred_check
        %p253 = pneg %p252
      $region34: #{_lambda_.1} parent=31 // pred_check_branch
        %255 = sbr.rel (%p253) target = $region36
      $region35: #{_lambda_.1} parent=31 // pred_region
        %256 = vst [vmem:[%s250] sm:$0xff] 0.0
      $region36: #{_lambda_.1} parent=31 // pred_fallthru
        _
      %v257 = vld [vmem:[%s250] sm:$0xff]
      %v258 = vld [vmem:[%s231] sm:$0xf]
      %v259 = vld [vmem:[%s239] sm:$0xf]
      %v260 = vld [vmem:[%s239 + $0x4] sm:$0xf]
      %v261 = vld [vmem:[%s239 + $0x8] sm:$0xf]
      %v262 = vld [vmem:[%s239 + $0xc] sm:$0xf]
      %v267 = vunpack.c.l.b16 %v259
      %v268 = vunpack.c.l.b16 %v260
      %v269 = vunpack.c.l.b16 %v261
      %v270 = vunpack.c.l.b16 %v262
      %v271 = vpack.c.b16 %v268, %v267
      %v272 = vpack.c.b16 %v270, %v269
      %vm275 = vcmask 261120
      %v277 = vsel %vm275, %v258, 0
      %279 = vmatprep.subr.bf16.mxu0 0
      %280 = vmatpush1.bf16.msra.mxu0 0
      %281 = vmatprep.subr.bf16.mxu0 0
      %282 = vmatpush1.bf16.msra.mxu0 0
      %283 = vmatprep.subr.bf16.mxu0 0
      %284 = vmatpush1.bf16.msra.mxu0 0
      %285 = vmatprep.subr.bf16.mxu0 0
      %286 = vmatpush1.bf16.msra.mxu0 0
      %287 = vmatprep.subr.bf16.mxu0 0
      %288 = vmatpush1.bf16.msra.mxu0 0
      %289 = vmatprep.subr.bf16.mxu0 0
      %290 = vmatpush1.bf16.msra.mxu0 0
      %291 = vmatprep.subr.bf16.mxu0 0
      %292 = vmatpush1.bf16.msra.mxu0 %v272
      %293 = vmatprep.subr.bf16.mxu0 0
      %294 = vmatpush1.bf16.msra.mxu0 %v271
      %295 = vmatprep.subr.bf16.mxu0 0
      %296 = vmatpush2.bf16.msra.mxu0 0
      %297 = vmatprep.subr.bf16.mxu0 0
      %298 = vmatpush2.bf16.msra.mxu0 0
      %299 = vmatprep.subr.bf16.mxu0 0
      %300 = vmatpush2.bf16.msra.mxu0 0
      %301 = vmatprep.subr.bf16.mxu0 0
      %302 = vmatpush2.bf16.msra.mxu0 0
      %303 = vmatprep.subr.bf16.mxu0 0
      %304 = vmatpush2.bf16.msra.mxu0 0
      %305 = vmatprep.subr.bf16.mxu0 0
      %306 = vmatpush2.bf16.msra.mxu0 0
      %307 = vmatprep.subr.bf16.mxu0 0
      %308 = vmatpush2.bf16.msra.mxu0 0
      %309 = vmatprep.subr.bf16.mxu0 0
      %310 = vmatpush2.bf16.msra.mxu0 0
      %311 = vmatprep.mubr.bf16.mxu0 0
      %312 = vmatmul.mubr.bf16.gmra.mxu0 %v277
      %v313 = vpop.f32.mrf.mxu0
      %v314 = vadd.f32 0.0, %v313
      %v315 = vpop.f32.mrf.mxu0
      %v316 = vpop.f32.mrf.mxu0
      %v317 = vpop.f32.mrf.mxu0
      %318 = vdwg.mxu0
      %v319 = vadd.f32 %v257, %v314
      %320 = vst [vmem:[%s250] sm:$0xff] %v319
      // Predicated region
      $region37: #{_lambda_.1} parent=31 // pred_check
        %p321 = pneg %p252
      $region38: #{_lambda_.1} parent=31 // pred_check_branch
        %323 = sbr.rel (%p321) target = $region40
      $region39: #{_lambda_.1} parent=31 // pred_region
        %v324 = vld [vmem:[%s250] sm:$0xff]
        %v325 = vld [vmem:[%s243] sm:$0x1]
        %v327 = vlaneseq
        %v328 = vshrl.u32 %v327, 7
        %v329 = vsub.s32 0, %v328
        %v330 = vrot.slane %v325, %v329
        %v332 = vadd.f32 %v324, %v330
        %v333 = vmax.f32 %v332, 0.0
        %334 = vst [vmem:[%s250] sm:$0xff] %v333
      $region40: #{_lambda_.1} parent=31 // pred_fallthru
        _
      %p335 = scmp.lt.s32.totalorder %s19, 1
      %s336 = scalar_select %p335, %s19, 1
      %p337 = scmp.lt.s32.totalorder %s20, 0
      %s338 = scalar_select %p337, %s20, 0
      %s339 = sadd.s32 %s338, %s336
      %s340 = smul.addr %s339, 8
      %s341 = scalar_lea.vmem %s3, %s340
      // Predicated region
      $region41: #{_lambda_.1} parent=31 // pred_check
        %p342 = pneg %p135
      $region42: #{_lambda_.1} parent=31 // pred_check_branch
        %344 = sbr.rel (%p342) target = $region44
      $region43: #{_lambda_.1} parent=31 // pred_region
        _
      $region44: #{_lambda_.1} parent=31 // pred_fallthru
        _
    $region32: #{_lambda_.1} parent=5 // pred_fallthru
      _
    %p345 = scmp.le.s32.totalorder 2, %s9
    // Predicated region
    $region45: #{_lambda_.1} parent=5 // pred_check
      %p346 = pneg %p345
    $region46: #{_lambda_.1} parent=5 // pred_check_branch
      %348 = sbr.rel (%p346) target = $region48
    $region47: #{_lambda_.1} parent=5 // pred_region
      %s349 = ssub.s32 %s9, 2
      // Predicated region
      $region49: #{_lambda_.1} parent=47 // pred_check
        %p350 = pneg %p141
      $region50: #{_lambda_.1} parent=47 // pred_check_branch
        %352 = sbr.rel (%p350) target = $region52
      $region51: #{_lambda_.1} parent=47 // pred_region
        %p353 = scmp.lt.s32.totalorder %s22, 1
        %s354 = scalar_select %p353, %s22, 1
        %p355 = scmp.lt.s32.totalorder %s23, 0
        %s356 = scalar_select %p355, %s23, 0
        %s357 = sadd.s32 %s356, %s354
        %s358 = smul.addr %s357, 8
        %s359 = scalar_lea.vmem %s3, %s358
      $region52: #{_lambda_.1} parent=47 // pred_fallthru
        _
    $region48: #{_lambda_.1} parent=5 // pred_fallthru
      _
  $region6: #{_lambda_.1} parent=0 // loop_footer
    %s13 = sadd.s32 1, %s9
  $region7: #{_lambda_.1} parent=0 // loop_footer_branch
    %8 = sbr.rel target = $region3
  $region8: #{_lambda_.1} parent=0 // loop_exit
    _

</llo_original>
